<compile_context>
chip_gen: v7x
topology: tpu7x:2x2x1
jax: 0.10.0
libtpu: 0.0.40
codegen_flags: <defaults>
</compile_context>

<pallas_src>
import functools

import jax
import jax.numpy as jnp
from jax.experimental import pallas as pl
from jax.experimental.pallas import tpu as pltpu


_LANE = 128       # lane width: feature-dim padding granularity
_SUBLANE = 8      # f32 sublane: batch-tile granularity
_TB_CAP = 1024    # default max rows per batch tile (sweepable)


def _ceil_div(a, b):
    return -(-a // b)


def _round_up(v, m):
    return _ceil_div(v, m) * m


def _cascade_kernel(x_ref, wxa_ref, ba_ref, *rest, padded_widths):
    """Fused cascade forward for one batch tile.

    rest = (wh_1, ..., wh_{L-1}, o_ref)   (layer 0 has no h-weight: h0 == x).
    Layer k:  y_k = h_k @ wh_k + xw_all[:, off_k : off_k + P_k]
    with ReLU on every layer except the last; the last layer's lane-0 column is
    packed across lanes and stored as a (1, tb) row.
    """
    o_ref = rest[-1]
    wh_refs = rest[:-1]
    n_layers = len(padded_widths)

    x = x_ref[...]                                           # (tb, Din) bf16
    # All x-projections + all biases with a single MXU dot.
    xw = (jnp.dot(x, wxa_ref[...], preferred_element_type=jnp.float32)
          + ba_ref[...])                                     # (tb, sum_P) f32

    h = None
    off = 0
    for k, pk in enumerate(padded_widths):
        y = xw[:, off:off + pk]                              # 128-aligned slice
        if k > 0:
            y = y + jnp.dot(h.astype(jnp.bfloat16), wh_refs[k - 1][...],
                            preferred_element_type=jnp.float32)
        if k < n_layers - 1:
            h = jnp.maximum(y, 0.0)                          # ReLU in f32 (VPU)
        else:
            # Dout == 1 lives in lane 0 of y. One XLU transpose (idle slot) packs
            # the per-sample scalar into lanes -> tb*4B writeback, not tb*128*4B.
            o_ref[...] = jnp.transpose(y)[:1, :].astype(o_ref.dtype)
        off += pk


def init_cascade_params(key, input_size, hidden_layers):
    """Deterministic init matching CascadeForwardNN.__init__ shapes.

    nn.Linear(in, out): weight (out, in), bias (out,), U(-1/sqrt(in), 1/sqrt(in)).
    Stored transposed here: weight (in, out), bias (1, out).
    """
    params = []
    prev_size = input_size
    sizes = list(hidden_layers) + [1]          # last entry is the output layer
    for h in sizes:
        fan_in = prev_size + input_size
        key, kw, kb = jax.random.split(key, 3)
        bound = 1.0 / jnp.sqrt(jnp.float32(fan_in))
        w = jax.random.uniform(kw, (fan_in, h), jnp.float32, -bound, bound)
        b = jax.random.uniform(kb, (1, h), jnp.float32, -bound, bound)
        params.append((w, b))
        prev_size = h
    return params


def _prepare_fused_params(params, input_size):
    """Split concat-weights, fold layer 0, pad out-dims to 128, fuse x-projections."""
    wx_blocks, b_blocks, wh_list, padded_widths = [], [], [], []
    prev_d = input_size
    prev_p = None
    for k, (w, b) in enumerate(params):
        d = w.shape[1]
        pk = _round_up(d, _LANE)
        w_h = w[:prev_d]                       # acts on h_k
        w_x = w[prev_d:]                       # acts on x
        if k == 0:
            w_x = w_x + w_h                    # h0 == x: fold h-part into x-projection
            w_h = None
        w_x = jnp.pad(w_x, ((0, 0), (0, pk - d)))
        b_p = jnp.pad(b, ((0, 0), (0, pk - d)))
        wx_blocks.append(w_x)
        b_blocks.append(b_p)
        if w_h is not None:
            w_h = jnp.pad(w_h, ((0, prev_p - prev_d), (0, pk - d)))
            wh_list.append(w_h.astype(jnp.bfloat16))
        padded_widths.append(pk)
        prev_d, prev_p = d, pk
    wx_all = jnp.concatenate(wx_blocks, axis=1).astype(jnp.bfloat16)
    b_all = jnp.concatenate(b_blocks, axis=1).astype(jnp.float32)
    return wx_all, b_all, wh_list, padded_widths


def cascade_forward(params, x, *, tb_cap=_TB_CAP):
    """Forward pass of CascadeForwardNN with one fused Pallas kernel."""
    B, input_size = x.shape
    wx_all, b_all, wh_list, padded_widths = _prepare_fused_params(params, input_size)
    sum_p = sum(padded_widths)

    # ---- batch tiling: derive tb from the grid count (bounded padding waste),
    # ---- and force >= 2 tiles for B >= 16 so v7x's two TCs both get work.
    grid_n = max(1, _ceil_div(B, tb_cap))
    if B >= 2 * _SUBLANE:
        grid_n = max(grid_n, 2)
    tb = _round_up(_ceil_div(B, grid_n), _SUBLANE)
    b_pad = grid_n * tb

    x_p = x if b_pad == B else jnp.pad(x, ((0, b_pad - B), (0, 0)))
    x_p = x_p.astype(jnp.bfloat16)             # halve x DMA bytes; MXU is bf16-native

    # ---- specs: x tiled over the batch grid; weights/biases resident (constant maps).
    flat_inputs = [x_p]
    in_specs = [pl.BlockSpec((tb, input_size), lambda i: (i, 0))]
    for arr in (wx_all, b_all, *wh_list):
        flat_inputs.append(arr)
        in_specs.append(pl.BlockSpec(arr.shape, lambda i: (0, 0)))
    # Packed output: one lane-dense (1, tb) f32 row per batch tile.
    out_specs = pl.BlockSpec((None, 1, tb), lambda i: (i, 0, 0))
    out_shape = jax.ShapeDtypeStruct((grid_n, 1, tb), jnp.float32)

    # ---- cost estimate + VMEM budget from actual buffer sizes.
    flops = 2 * b_pad * input_size * sum_p
    prev = padded_widths[0]
    for pk in padded_widths[1:]:
        flops += 2 * b_pad * prev * pk
        prev = pk
    weight_bytes = (int(wx_all.size) * 2 + int(b_all.size) * 4
                    + sum(int(w.size) * 2 for w in wh_list))
    bytes_accessed = int(x_p.size) * 2 + weight_bytes + b_pad * 4

    io_buf_bytes = 2 * (tb * input_size * 2) + 2 * (tb * 4)            # double-buffered x / out tiles
    scratch_bytes = tb * sum_p * 4 + 4 * tb * max(padded_widths) * 4   # xw_all + live temporaries
    needed = 2 * weight_bytes + io_buf_bytes + scratch_bytes           # weights double-buffered by default
    vmem_limit = int(min(max(needed + (8 << 20), 32 << 20), 64 << 20))  # stay within v7x's 64 MiB

    out = pl.pallas_call(
        functools.partial(_cascade_kernel, padded_widths=tuple(padded_widths)),
        out_shape=out_shape,
        grid=(grid_n,),
        in_specs=in_specs,
        out_specs=out_specs,
        compiler_params=pltpu.CompilerParams(
            dimension_semantics=("parallel",),   # shard batch tiles across v7x's 2 TCs
            vmem_limit_bytes=vmem_limit,
        ),
        cost_estimate=pl.CostEstimate(
            flops=flops, transcendentals=0, bytes_accessed=bytes_accessed),
    )(*flat_inputs)

    # Tiny unpack: (grid_n, 1, tb) packed rows -> (B, 1); reads only b_pad*4 bytes.
    return out.reshape(-1)[:B].reshape(B, 1)


def _reference_forward(params, x):
    """Pure-JAX f32 reference matching the PyTorch forward."""
    inputs = x
    for (w, b) in params[:-1]:
        inputs = jnp.concatenate([inputs, x], axis=1)
        inputs = jnp.maximum(inputs @ w + b, 0.0)
    inputs = jnp.concatenate([inputs, x], axis=1)
    w_out, b_out = params[-1]
    return inputs @ w_out + b_out


if __name__ == "__main__":
    input_size = 16
    hidden_layers = (32, 16)

    key = jax.random.PRNGKey(0)
    key, kx1, kx2 = jax.random.split(key, 3)
    params = init_cascade_params(key, input_size, hidden_layers)

    # Small single-tile case (batch=8).
    x_small = jax.random.normal(kx1, (8, input_size), jnp.float32)
    out_small = jax.block_until_ready(cascade_forward(params, x_small))
    assert out_small.shape == (8, 1), out_small.shape
    ref_small = _reference_forward(params, x_small)
    assert jnp.allclose(out_small, ref_small, atol=2e-2, rtol=2e-2), float(
        jnp.max(jnp.abs(out_small - ref_small)))

    # Multi-tile case (batch=300): exercises grid=2 + padded batch rows.
    x_big = jax.random.normal(kx2, (300, input_size), jnp.float32)
    out_big = jax.block_until_ready(cascade_forward(params, x_big))
    assert out_big.shape == (300, 1), out_big.shape
    ref_big = _reference_forward(params, x_big)
    assert jnp.allclose(out_big, ref_big, atol=2e-2, rtol=2e-2), float(
        jnp.max(jnp.abs(out_big - ref_big)))

    print("KERNEL_OK")
</pallas_src>

<mosaic_0001>
module attributes {stable_mosaic.version = 11 : i64} {
  func.func @_cascade_kernel(%arg0: i32, %arg1: memref<8x16xbf16, #tpu.memory_space<vmem>>, %arg2: memref<16x384xbf16, #tpu.memory_space<vmem>>, %arg3: memref<1x384xf32, #tpu.memory_space<vmem>>, %arg4: memref<128x128xbf16, #tpu.memory_space<vmem>>, %arg5: memref<128x128xbf16, #tpu.memory_space<vmem>>, %arg6: memref<1x1x8xf32, #tpu.memory_space<vmem>>) attributes {dimension_semantics = [#tpu.dimension_semantics<parallel>], iteration_bounds = array<i64: 1>, scalar_prefetch = 0 : i64, scratch_operands = 0 : i64, tpu.core_type = #tpu.core_type<tc>, window_params = [{transform_indices = @transform_0, window_bounds = array<i64: 8, 16>}, {pipeline_mode = #tpu.pipeline_mode<synchronous>, transform_indices = @transform_1, window_bounds = array<i64: 16, 384>}, {pipeline_mode = #tpu.pipeline_mode<synchronous>, transform_indices = @transform_2, window_bounds = array<i64: 1, 384>}, {pipeline_mode = #tpu.pipeline_mode<synchronous>, transform_indices = @transform_3, window_bounds = array<i64: 128, 128>}, {pipeline_mode = #tpu.pipeline_mode<synchronous>, transform_indices = @transform_4, window_bounds = array<i64: 128, 128>}, {transform_indices = @transform_5, window_bounds = array<i64: 1, 1, 8>}]} {
    %c0 = arith.constant 0 : index
    %c0_0 = arith.constant 0 : index
    %0 = vector.load %arg1[%c0, %c0_0] : memref<8x16xbf16, #tpu.memory_space<vmem>>, vector<8x16xbf16>
    %c0_1 = arith.constant 0 : index
    %c0_2 = arith.constant 0 : index
    %1 = vector.load %arg2[%c0_1, %c0_2] : memref<16x384xbf16, #tpu.memory_space<vmem>>, vector<16x384xbf16>
    %cst = arith.constant dense<0.000000e+00> : vector<8x384xf32>
    %2 = tpu.matmul %0, %1, %cst {dimension_numbers = #tpu.dot_dimension_numbers<[1], [0], [0], [1], [0, 0, 1, 1], [], []>} : vector<8x16xbf16>, vector<16x384xbf16>, vector<8x384xf32> -> vector<8x384xf32>
    %c0_3 = arith.constant 0 : index
    %c0_4 = arith.constant 0 : index
    %3 = vector.load %arg3[%c0_3, %c0_4] : memref<1x384xf32, #tpu.memory_space<vmem>>, vector<1x384xf32>
    %4 = vector.broadcast %3 : vector<1x384xf32> to vector<8x384xf32>
    %5 = arith.addf %2, %4 : vector<8x384xf32>
    %6 = vector.extract_strided_slice %5 {offsets = [0, 0], sizes = [8, 128], strides = [1, 1]} : vector<8x384xf32> to vector<8x128xf32>
    %cst_5 = arith.constant 0.000000e+00 : f32
    %7 = vector.broadcast %cst_5 : f32 to vector<8x128xf32>
    %8 = arith.maximumf %6, %7 : vector<8x128xf32>
    %9 = vector.extract_strided_slice %5 {offsets = [0, 128], sizes = [8, 128], strides = [1, 1]} : vector<8x384xf32> to vector<8x128xf32>
    %10 = arith.truncf %8 : vector<8x128xf32> to vector<8x128xbf16>
    %c0_6 = arith.constant 0 : index
    %c0_7 = arith.constant 0 : index
    %11 = vector.load %arg4[%c0_6, %c0_7] : memref<128x128xbf16, #tpu.memory_space<vmem>>, vector<128x128xbf16>
    %cst_8 = arith.constant dense<0.000000e+00> : vector<8x128xf32>
    %12 = tpu.matmul %10, %11, %cst_8 {dimension_numbers = #tpu.dot_dimension_numbers<[1], [0], [0], [1], [0, 0, 1, 1], [], []>} : vector<8x128xbf16>, vector<128x128xbf16>, vector<8x128xf32> -> vector<8x128xf32>
    %13 = arith.addf %9, %12 : vector<8x128xf32>
    %cst_9 = arith.constant 0.000000e+00 : f32
    %14 = vector.broadcast %cst_9 : f32 to vector<8x128xf32>
    %15 = arith.maximumf %13, %14 : vector<8x128xf32>
    %16 = vector.extract_strided_slice %5 {offsets = [0, 256], sizes = [8, 128], strides = [1, 1]} : vector<8x384xf32> to vector<8x128xf32>
    %17 = arith.truncf %15 : vector<8x128xf32> to vector<8x128xbf16>
    %c0_10 = arith.constant 0 : index
    %c0_11 = arith.constant 0 : index
    %18 = vector.load %arg5[%c0_10, %c0_11] : memref<128x128xbf16, #tpu.memory_space<vmem>>, vector<128x128xbf16>
    %cst_12 = arith.constant dense<0.000000e+00> : vector<8x128xf32>
    %19 = tpu.matmul %17, %18, %cst_12 {dimension_numbers = #tpu.dot_dimension_numbers<[1], [0], [0], [1], [0, 0, 1, 1], [], []>} : vector<8x128xbf16>, vector<128x128xbf16>, vector<8x128xf32> -> vector<8x128xf32>
    %20 = arith.addf %16, %19 : vector<8x128xf32>
    %21 = tpu.transpose %20, [1, 0] : vector<8x128xf32> -> vector<128x8xf32>
    %22 = vector.extract_strided_slice %21 {offsets = [0, 0], sizes = [1, 8], strides = [1, 1]} : vector<128x8xf32> to vector<1x8xf32>
    %c0_13 = arith.constant 0 : index
    %c0_14 = arith.constant 0 : index
    %c0_15 = arith.constant 0 : index
    %23 = vector.load %arg6[%c0_13, %c0_14, %c0_15] : memref<1x1x8xf32, #tpu.memory_space<vmem>>, vector<1x1x8xf32>
    %24 = vector.shape_cast %23 : vector<1x1x8xf32> to vector<1x8xf32>
    %25 = vector.shape_cast %22 : vector<1x8xf32> to vector<1x1x8xf32>
    tpu.vector_store %arg6[%c0_13, %c0_14, %c0_15], %25 {strides = array<i32>} : memref<1x1x8xf32, #tpu.memory_space<vmem>>, vector<1x1x8xf32>,
    return
  }
  func.func @transform_0(%arg0: i32) -> (i32, i32) {
    %c0_i32 = arith.constant 0 : i32
    %c0_i32_0 = arith.constant 0 : i32
    return %arg0, %c0_i32 : i32, i32
  }
  func.func @transform_1(%arg0: i32) -> (i32, i32) {
    %c0_i32 = arith.constant 0 : i32
    %c0_i32_0 = arith.constant 0 : i32
    %c0_i32_1 = arith.constant 0 : i32
    return %c0_i32, %c0_i32_0 : i32, i32
  }
  func.func @transform_2(%arg0: i32) -> (i32, i32) {
    %c0_i32 = arith.constant 0 : i32
    %c0_i32_0 = arith.constant 0 : i32
    %c0_i32_1 = arith.constant 0 : i32
    return %c0_i32, %c0_i32_0 : i32, i32
  }
  func.func @transform_3(%arg0: i32) -> (i32, i32) {
    %c0_i32 = arith.constant 0 : i32
    %c0_i32_0 = arith.constant 0 : i32
    %c0_i32_1 = arith.constant 0 : i32
    return %c0_i32, %c0_i32_0 : i32, i32
  }
  func.func @transform_4(%arg0: i32) -> (i32, i32) {
    %c0_i32 = arith.constant 0 : i32
    %c0_i32_0 = arith.constant 0 : i32
    %c0_i32_1 = arith.constant 0 : i32
    return %c0_i32, %c0_i32_0 : i32, i32
  }
  func.func @transform_5(%arg0: i32) -> (i32, i32, i32) {
    %c0_i32 = arith.constant 0 : i32
    %c0_i32_0 = arith.constant 0 : i32
    %c0_i32_1 = arith.constant 0 : i32
    return %arg0, %c0_i32, %c0_i32_0 : i32, i32, i32
  }
}

</mosaic_0001>

<llo_original>
// kernel: tpu_custom_call.1
$region0: #{tpu_custom_call.1}
  #allocation0 [shape = 'u32[]', space=smem, size = 0x4, offset = 0x4, fixed_abs, tag = 'smem constant byte address 0x4 - core index']
  #allocation1 [shape = 'u32[144,128]{1,0:T(1,128)}', space=vmem, size = 0x12000, scoped, tag = 'internal scratch']
  %s0 = inlined_call_operand.hbm [shape: bf16[8,16], index: 0, kind: input, shape index: {}]
  %s1 = inlined_call_operand.hbm [shape: bf16[16,384], index: 1, kind: input, shape index: {}]
  %s2 = inlined_call_operand.vmem [shape: f32[1,384], index: 2, kind: input, shape index: {}]
  %s3 = inlined_call_operand.hbm [shape: bf16[128,128], index: 3, kind: input, shape index: {}]
  %s4 = inlined_call_operand.hbm [shape: bf16[128,128], index: 4, kind: input, shape index: {}]
  %s5 = inlined_call_operand.hbm [shape: f32[1,1,8], index: 5, kind: output, shape index: {}]
  %s6 = sld [smem:[#allocation0]]
  $region46: #{tpu_custom_call.1} parent=0
    _
  %s8 = ssub.s32 1, %s6
  %s9 = scalar_select 0, %s8, %s6
  $region1: #{tpu_custom_call.1} parent=0
    #allocation2 [shape = 'u8[2048]{0}', space=vmem, size = 0x800, scoped, tag = 'input window, operand 0, single buffered']
    #allocation3 [shape = 's32[1]{0}', space=sflag, size = 0x4, scoped, tag = 'scoped memory for tpu_custom_call.1']
    #allocation4 [shape = 's32[1]{0}', space=sflag, size = 0x4, scoped, tag = 'scoped memory for tpu_custom_call.1']
    #allocation5 [shape = 'u8[12288]{0}', space=vmem, size = 0x3000, scoped, tag = 'input window, operand 1, single buffered']
    #allocation6 [shape = 's32[1]{0}', space=sflag, size = 0x4, scoped, tag = 'scoped memory for tpu_custom_call.1']
    #allocation7 [shape = 'u8[32768]{0}', space=vmem, size = 0x8000, scoped, tag = 'input window, operand 3, single buffered']
    #allocation8 [shape = 'u8[32768]{0}', space=vmem, size = 0x8000, scoped, tag = 'input window, operand 4, single buffered']
    #allocation9 [shape = 's32[1]{0}', space=sflag, size = 0x4, scoped, tag = 'scoped memory for tpu_custom_call.1']
    #allocation10 [shape = 'u8[512]{0}', space=vmem, size = 0x400, scoped, tag = 'output window, operand 0, single buffered']
    %10 = vsyncpa [#allocation3], 0
    %11 = vsyncpa [#allocation6], 0
    %12 = vsyncpa [#allocation9], 0
    %13 = vsyncpa [#allocation4], 0
    // Predicated region
    $region2: #{tpu_custom_call.1} parent=1 // pred_check
      _
    $region3: #{tpu_custom_call.1} parent=1 // pred_check_branch
      %15 = sbr.rel (0) target = $region5
    $region4: #{tpu_custom_call.1} parent=1 // pred_region
      %s17 = ssub.s32 64, 64
      %18 = vsyncadd [#allocation3], %s17
      %s20 = sshll.u32 [#allocation2], 4
      %s21 = int_to_ptr.vmem [resolvable:$true] %s20
      %23 = dma.hbm_to_vmem [thread:$0]  %s0, 64, %s21, [#allocation3]
    $region5: #{tpu_custom_call.1} parent=1 // pred_fallthru
      _
    // Predicated region
    $region6: #{tpu_custom_call.1} parent=1 // pred_check
      _
    $region7: #{tpu_custom_call.1} parent=1 // pred_check_branch
      %25 = sbr.rel (0) target = $region9
    $region8: #{tpu_custom_call.1} parent=1 // pred_region
      %s27 = ssub.s32 384, 384
      %28 = vsyncadd [#allocation6], %s27
      %s29 = sshll.u32 [#allocation5], 4
      %s30 = int_to_ptr.vmem [resolvable:$true] %s29
      %35 = dma.hbm_to_vmem [thread:$0]  %s1, 384, %s30, [#allocation6], 192, 192, 12
    $region9: #{tpu_custom_call.1} parent=1 // pred_fallthru
      _
    // Predicated region
    $region10: #{tpu_custom_call.1} parent=1 // pred_check
      _
    $region11: #{tpu_custom_call.1} parent=1 // pred_check_branch
      %37 = sbr.rel (0) target = $region13
    $region12: #{tpu_custom_call.1} parent=1 // pred_region
      _
    $region13: #{tpu_custom_call.1} parent=1 // pred_fallthru
      _
    // Predicated region
    $region14: #{tpu_custom_call.1} parent=1 // pred_check
      _
    $region15: #{tpu_custom_call.1} parent=1 // pred_check_branch
      %39 = sbr.rel (0) target = $region17
    $region16: #{tpu_custom_call.1} parent=1 // pred_region
      %s41 = ssub.s32 1024, 1024
      %42 = vsyncadd [#allocation6], %s41
      %s43 = sshll.u32 [#allocation7], 4
      %s44 = int_to_ptr.vmem [resolvable:$true] %s43
      %49 = dma.hbm_to_vmem [thread:$0]  %s3, 1024, %s44, [#allocation6], 64, 64, 4
    $region17: #{tpu_custom_call.1} parent=1 // pred_fallthru
      _
    // Predicated region
    $region18: #{tpu_custom_call.1} parent=1 // pred_check
      _
    $region19: #{tpu_custom_call.1} parent=1 // pred_check_branch
      %51 = sbr.rel (0) target = $region21
    $region20: #{tpu_custom_call.1} parent=1 // pred_region
      %s53 = ssub.s32 1024, 1024
      %54 = vsyncadd [#allocation9], %s53
      %s55 = sshll.u32 [#allocation8], 4
      %s56 = int_to_ptr.vmem [resolvable:$true] %s55
      %61 = dma.hbm_to_vmem [thread:$0]  %s4, 1024, %s56, [#allocation9], 64, 64, 4
    $region21: #{tpu_custom_call.1} parent=1 // pred_fallthru
      _
    // Predicated region
    $region22: #{tpu_custom_call.1} parent=1 // pred_check
      _
    $region23: #{tpu_custom_call.1} parent=1 // pred_check_branch
      %63 = sbr.rel (0) target = $region25
    $region24: #{tpu_custom_call.1} parent=1 // pred_region
      %64 = dma.done [#allocation3], 64
    $region25: #{tpu_custom_call.1} parent=1 // pred_fallthru
      _
    // Predicated region
    $region26: #{tpu_custom_call.1} parent=1 // pred_check
      _
    $region27: #{tpu_custom_call.1} parent=1 // pred_check_branch
      %66 = sbr.rel (0) target = $region29
    $region28: #{tpu_custom_call.1} parent=1 // pred_region
      %67 = dma.done [#allocation6], 384
    $region29: #{tpu_custom_call.1} parent=1 // pred_fallthru
      _
    // Predicated region
    $region30: #{tpu_custom_call.1} parent=1 // pred_check
      _
    $region31: #{tpu_custom_call.1} parent=1 // pred_check_branch
      %69 = sbr.rel (0) target = $region33
    $region32: #{tpu_custom_call.1} parent=1 // pred_region
      %70 = dma.done [#allocation6], 1024
    $region33: #{tpu_custom_call.1} parent=1 // pred_fallthru
      _
    // Predicated region
    $region34: #{tpu_custom_call.1} parent=1 // pred_check
      _
    $region35: #{tpu_custom_call.1} parent=1 // pred_check_branch
      %72 = sbr.rel (0) target = $region37
    $region36: #{tpu_custom_call.1} parent=1 // pred_region
      %73 = dma.done [#allocation9], 1024
    $region37: #{tpu_custom_call.1} parent=1 // pred_fallthru
      _
    %v75 = vld [vmem:[#allocation2] sm:$0xf]
    %v76 = vld [vmem:[#allocation5] sm:$0xff]
    %v77 = vld [vmem:[#allocation5 + $0x8] sm:$0xf]
    %v78 = vld [vmem:[#allocation5 + $0xc] sm:$0xff]
    %v79 = vld [vmem:[#allocation5 + $0x14] sm:$0xf]
    %v80 = vld [vmem:[%s2] sm:$0x7]
    %v82 = vlaneseq
    %v83 = vshrl.u32 %v82, 7
    %v84 = vsub.s32 0, %v83
    %v85 = vrot.slane %v80, %v84
    %v86 = vlaneseq
    %v87 = vshrl.u32 %v86, 7
    %v88 = vsub.s32 1, %v87
    %v89 = vrot.slane %v80, %v88
    %v90 = vlaneseq
    %v91 = vshrl.u32 %v90, 7
    %v92 = vsub.s32 2, %v91
    %v93 = vrot.slane %v80, %v92
    %v101 = vunpack.c.l.b16 %v76
    %v102 = vunpack.c.h.b16 %v76
    %v103 = vunpack.c.l.b16 %v77
    %v104 = vunpack.c.l.b16 %v78
    %v105 = vunpack.c.h.b16 %v78
    %v106 = vunpack.c.l.b16 %v79
    %v107 = vpack.c.b16 %v104, %v101
    %v108 = vpack.c.b16 %v105, %v102
    %v109 = vpack.c.b16 %v106, %v103
    %vm113 = vcmask 130048
    %v115 = vsel %vm113, %v75, 0
    %117 = vmatprep.subr.bf16.mxu0 %v108
    %118 = vmatpush1.bf16.msra.mxu0 %v107
    %119 = vmatprep.subr.bf16.mxu0 0
    %120 = vmatpush1.bf16.msra.mxu0 0
    %121 = vmatprep.subr.bf16.mxu0 0
    %122 = vmatpush1.bf16.msra.mxu0 0
    %123 = vmatprep.subr.bf16.mxu0 0
    %124 = vmatpush1.bf16.msra.mxu0 0
    %125 = vmatprep.subr.bf16.mxu0 0
    %126 = vmatpush1.bf16.msra.mxu0 0
    %127 = vmatprep.subr.bf16.mxu0 0
    %128 = vmatpush1.bf16.msra.mxu0 0
    %129 = vmatprep.subr.bf16.mxu0 0
    %130 = vmatpush1.bf16.msra.mxu0 0
    %131 = vmatprep.subr.bf16.mxu0 0
    %132 = vmatpush1.bf16.msra.mxu0 0
    %133 = vmatprep.subr.bf16.mxu0 0
    %134 = vmatpush1.bf16.msra.mxu0 0
    %135 = vmatprep.subr.bf16.mxu0 0
    %136 = vmatpush1.bf16.msra.mxu0 0
    %137 = vmatprep.subr.bf16.mxu0 0
    %138 = vmatpush1.bf16.msra.mxu0 0
    %139 = vmatprep.subr.bf16.mxu0 0
    %140 = vmatpush1.bf16.msra.mxu0 0
    %141 = vmatprep.subr.bf16.mxu0 0
    %142 = vmatpush1.bf16.msra.mxu0 0
    %143 = vmatprep.subr.bf16.mxu0 0
    %144 = vmatpush1.bf16.msra.mxu0 0
    %145 = vmatprep.subr.bf16.mxu0 0
    %146 = vmatpush1.bf16.msra.mxu0 0
    %147 = vmatprep.subr.bf16.mxu0 0
    %148 = vmatpush1.bf16.msra.mxu0 0
    %149 = vmatprep.mubr.bf16.mxu0 0
    %150 = vmatmul.mubr.bf16.gmra.mrb[0].mxu0 %v115
    %v151 = vpop.f32.mrb[0].mxu0
    %v152 = vadd.f32 %v85, %v151
    %v153 = vpop.f32.mrb[0].mxu0
    %v154 = vadd.f32 %v89, %v153
    %v155 = vpop.f32.mrb[0].mxu0
    %v156 = vpop.f32.mrb[0].mxu0
    %157 = vdwg.mxu0
    %158 = vmatprep.subr.bf16.mxu0 0
    %159 = vmatpush1.bf16.msra.mxu0 %v109
    %160 = vmatprep.subr.bf16.mxu0 0
    %161 = vmatpush1.bf16.msra.mxu0 0
    %162 = vmatprep.subr.bf16.mxu0 0
    %163 = vmatpush1.bf16.msra.mxu0 0
    %164 = vmatprep.subr.bf16.mxu0 0
    %165 = vmatpush1.bf16.msra.mxu0 0
    %166 = vmatprep.subr.bf16.mxu0 0
    %167 = vmatpush1.bf16.msra.mxu0 0
    %168 = vmatprep.subr.bf16.mxu0 0
    %169 = vmatpush1.bf16.msra.mxu0 0
    %170 = vmatprep.subr.bf16.mxu0 0
    %171 = vmatpush1.bf16.msra.mxu0 0
    %172 = vmatprep.subr.bf16.mxu0 0
    %173 = vmatpush1.bf16.msra.mxu0 0
    %174 = vmatprep.subr.bf16.mxu0 0
    %175 = vmatpush1.bf16.msra.mxu0 0
    %176 = vmatprep.subr.bf16.mxu0 0
    %177 = vmatpush1.bf16.msra.mxu0 0
    %178 = vmatprep.subr.bf16.mxu0 0
    %179 = vmatpush1.bf16.msra.mxu0 0
    %180 = vmatprep.subr.bf16.mxu0 0
    %181 = vmatpush1.bf16.msra.mxu0 0
    %182 = vmatprep.subr.bf16.mxu0 0
    %183 = vmatpush1.bf16.msra.mxu0 0
    %184 = vmatprep.subr.bf16.mxu0 0
    %185 = vmatpush1.bf16.msra.mxu0 0
    %186 = vmatprep.subr.bf16.mxu0 0
    %187 = vmatpush1.bf16.msra.mxu0 0
    %188 = vmatprep.subr.bf16.mxu0 0
    %189 = vmatpush1.bf16.msra.mxu0 0
    %190 = vmatprep.mubr.bf16.mxu0 0
    %191 = vmatmul.mubr.bf16.gmra.mrb[0].mxu0 %v115
    %v192 = vpop.f32.mrb[0].mxu0
    %v193 = vadd.f32 %v93, %v192
    %v194 = vpop.f32.mrb[0].mxu0
    %v195 = vpop.f32.mrb[0].mxu0
    %v196 = vpop.f32.mrb[0].mxu0
    %197 = vdwg.mxu0
    %v198 = vmax.f32 %v152, 0.0
    %v199 = vpack.c.bf16 %v198, %v198
    %v200 = vld [vmem:[#allocation7] sm:$0xf]
    %v201 = vld [vmem:[#allocation7 + $0x4] sm:$0xf]
    %v202 = vld [vmem:[#allocation7 + $0x8] sm:$0xf]
    %v203 = vld [vmem:[#allocation7 + $0xc] sm:$0xf]
    %v204 = vld [vmem:[#allocation7 + $0x10] sm:$0xf]
    %v205 = vld [vmem:[#allocation7 + $0x14] sm:$0xf]
    %v206 = vld [vmem:[#allocation7 + $0x18] sm:$0xf]
    %v207 = vld [vmem:[#allocation7 + $0x1c] sm:$0xf]
    %v208 = vld [vmem:[#allocation7 + $0x20] sm:$0xf]
    %v209 = vld [vmem:[#allocation7 + $0x24] sm:$0xf]
    %v210 = vld [vmem:[#allocation7 + $0x28] sm:$0xf]
    %v211 = vld [vmem:[#allocation7 + $0x2c] sm:$0xf]
    %v212 = vld [vmem:[#allocation7 + $0x30] sm:$0xf]
    %v213 = vld [vmem:[#allocation7 + $0x34] sm:$0xf]
    %v214 = vld [vmem:[#allocation7 + $0x38] sm:$0xf]
    %v215 = vld [vmem:[#allocation7 + $0x3c] sm:$0xf]
    %v232 = vunpack.c.l.b16 %v200
    %v233 = vunpack.c.l.b16 %v201
    %v234 = vunpack.c.l.b16 %v202
    %v235 = vunpack.c.l.b16 %v203
    %v236 = vunpack.c.l.b16 %v204
    %v237 = vunpack.c.l.b16 %v205
    %v238 = vunpack.c.l.b16 %v206
    %v239 = vunpack.c.l.b16 %v207
    %v240 = vunpack.c.l.b16 %v208
    %v241 = vunpack.c.l.b16 %v209
    %v242 = vunpack.c.l.b16 %v210
    %v243 = vunpack.c.l.b16 %v211
    %v244 = vunpack.c.l.b16 %v212
    %v245 = vunpack.c.l.b16 %v213
    %v246 = vunpack.c.l.b16 %v214
    %v247 = vunpack.c.l.b16 %v215
    %v248 = vpack.c.b16 %v233, %v232
    %v249 = vpack.c.b16 %v235, %v234
    %v250 = vpack.c.b16 %v237, %v236
    %v251 = vpack.c.b16 %v239, %v238
    %v252 = vpack.c.b16 %v241, %v240
    %v253 = vpack.c.b16 %v243, %v242
    %v254 = vpack.c.b16 %v245, %v244
    %v255 = vpack.c.b16 %v247, %v246
    %264 = vmatprep.subr.bf16.mxu0 0
    %265 = vmatpush1.bf16.msra.mxu0 %v248
    %266 = vmatprep.subr.bf16.mxu0 0
    %267 = vmatpush1.bf16.msra.mxu0 %v249
    %268 = vmatprep.subr.bf16.mxu0 0
    %269 = vmatpush1.bf16.msra.mxu0 %v250
    %270 = vmatprep.subr.bf16.mxu0 0
    %271 = vmatpush1.bf16.msra.mxu0 %v251
    %272 = vmatprep.subr.bf16.mxu0 0
    %273 = vmatpush1.bf16.msra.mxu0 %v252
    %274 = vmatprep.subr.bf16.mxu0 0
    %275 = vmatpush1.bf16.msra.mxu0 %v253
    %276 = vmatprep.subr.bf16.mxu0 0
    %277 = vmatpush1.bf16.msra.mxu0 %v254
    %278 = vmatprep.subr.bf16.mxu0 0
    %279 = vmatpush1.bf16.msra.mxu0 %v255
    %280 = vmatprep.subr.bf16.mxu0 0
    %281 = vmatpush1.bf16.msra.mxu0 0
    %282 = vmatprep.subr.bf16.mxu0 0
    %283 = vmatpush1.bf16.msra.mxu0 0
    %284 = vmatprep.subr.bf16.mxu0 0
    %285 = vmatpush1.bf16.msra.mxu0 0
    %286 = vmatprep.subr.bf16.mxu0 0
    %287 = vmatpush1.bf16.msra.mxu0 0
    %288 = vmatprep.subr.bf16.mxu0 0
    %289 = vmatpush1.bf16.msra.mxu0 0
    %290 = vmatprep.subr.bf16.mxu0 0
    %291 = vmatpush1.bf16.msra.mxu0 0
    %292 = vmatprep.subr.bf16.mxu0 0
    %293 = vmatpush1.bf16.msra.mxu0 0
    %294 = vmatprep.subr.bf16.mxu0 0
    %295 = vmatpush1.bf16.msra.mxu0 0
    %296 = vmatprep.mubr.bf16.mxu0 0
    %297 = vmatmul.mubr.bf16.gmra.mrb[0].mxu0 %v199
    %v298 = vpop.f32.mrb[0].mxu0
    %v299 = vadd.f32 0.0, %v298
    %v300 = vpop.f32.mrb[0].mxu0
    %v301 = vpop.f32.mrb[0].mxu0
    %v302 = vpop.f32.mrb[0].mxu0
    %303 = vdwg.mxu0
    %v304 = vadd.f32 %v154, %v299
    %v305 = vmax.f32 %v304, 0.0
    %v306 = vpack.c.bf16 %v305, %v305
    %v307 = vld [vmem:[#allocation8] sm:$0xf]
    %v308 = vld [vmem:[#allocation8 + $0x4] sm:$0xf]
    %v309 = vld [vmem:[#allocation8 + $0x8] sm:$0xf]
    %v310 = vld [vmem:[#allocation8 + $0xc] sm:$0xf]
    %v311 = vld [vmem:[#allocation8 + $0x10] sm:$0xf]
    %v312 = vld [vmem:[#allocation8 + $0x14] sm:$0xf]
    %v313 = vld [vmem:[#allocation8 + $0x18] sm:$0xf]
    %v314 = vld [vmem:[#allocation8 + $0x1c] sm:$0xf]
    %v315 = vld [vmem:[#allocation8 + $0x20] sm:$0xf]
    %v316 = vld [vmem:[#allocation8 + $0x24] sm:$0xf]
    %v317 = vld [vmem:[#allocation8 + $0x28] sm:$0xf]
    %v318 = vld [vmem:[#allocation8 + $0x2c] sm:$0xf]
    %v319 = vld [vmem:[#allocation8 + $0x30] sm:$0xf]
    %v320 = vld [vmem:[#allocation8 + $0x34] sm:$0xf]
    %v321 = vld [vmem:[#allocation8 + $0x38] sm:$0xf]
    %v322 = vld [vmem:[#allocation8 + $0x3c] sm:$0xf]
    %v339 = vunpack.c.l.b16 %v307
    %v340 = vunpack.c.l.b16 %v308
    %v341 = vunpack.c.l.b16 %v309
    %v342 = vunpack.c.l.b16 %v310
    %v343 = vunpack.c.l.b16 %v311
    %v344 = vunpack.c.l.b16 %v312
    %v345 = vunpack.c.l.b16 %v313
    %v346 = vunpack.c.l.b16 %v314
    %v347 = vunpack.c.l.b16 %v315
    %v348 = vunpack.c.l.b16 %v316
    %v349 = vunpack.c.l.b16 %v317
    %v350 = vunpack.c.l.b16 %v318
    %v351 = vunpack.c.l.b16 %v319
    %v352 = vunpack.c.l.b16 %v320
    %v353 = vunpack.c.l.b16 %v321
    %v354 = vunpack.c.l.b16 %v322
    %v355 = vpack.c.b16 %v340, %v339
    %v356 = vpack.c.b16 %v342, %v341
    %v357 = vpack.c.b16 %v344, %v343
    %v358 = vpack.c.b16 %v346, %v345
    %v359 = vpack.c.b16 %v348, %v347
    %v360 = vpack.c.b16 %v350, %v349
    %v361 = vpack.c.b16 %v352, %v351
    %v362 = vpack.c.b16 %v354, %v353
    %371 = vmatprep.subr.bf16.mxu0 0
    %372 = vmatpush1.bf16.msra.mxu0 %v355
    %373 = vmatprep.subr.bf16.mxu0 0
    %374 = vmatpush1.bf16.msra.mxu0 %v356
    %375 = vmatprep.subr.bf16.mxu0 0
    %376 = vmatpush1.bf16.msra.mxu0 %v357
    %377 = vmatprep.subr.bf16.mxu0 0
    %378 = vmatpush1.bf16.msra.mxu0 %v358
    %379 = vmatprep.subr.bf16.mxu0 0
    %380 = vmatpush1.bf16.msra.mxu0 %v359
    %381 = vmatprep.subr.bf16.mxu0 0
    %382 = vmatpush1.bf16.msra.mxu0 %v360
    %383 = vmatprep.subr.bf16.mxu0 0
    %384 = vmatpush1.bf16.msra.mxu0 %v361
    %385 = vmatprep.subr.bf16.mxu0 0
    %386 = vmatpush1.bf16.msra.mxu0 %v362
    %387 = vmatprep.subr.bf16.mxu0 0
    %388 = vmatpush1.bf16.msra.mxu0 0
    %389 = vmatprep.subr.bf16.mxu0 0
    %390 = vmatpush1.bf16.msra.mxu0 0
    %391 = vmatprep.subr.bf16.mxu0 0
    %392 = vmatpush1.bf16.msra.mxu0 0
    %393 = vmatprep.subr.bf16.mxu0 0
    %394 = vmatpush1.bf16.msra.mxu0 0
    %395 = vmatprep.subr.bf16.mxu0 0
    %396 = vmatpush1.bf16.msra.mxu0 0
    %397 = vmatprep.subr.bf16.mxu0 0
    %398 = vmatpush1.bf16.msra.mxu0 0
    %399 = vmatprep.subr.bf16.mxu0 0
    %400 = vmatpush1.bf16.msra.mxu0 0
    %401 = vmatprep.subr.bf16.mxu0 0
    %402 = vmatpush1.bf16.msra.mxu0 0
    %403 = vmatprep.mubr.bf16.mxu0 0
    %404 = vmatmul.mubr.bf16.gmra.mrb[0].mxu0 %v306
    %v405 = vpop.f32.mrb[0].mxu0
    %v406 = vadd.f32 0.0, %v405
    %v407 = vpop.f32.mrb[0].mxu0
    %v408 = vpop.f32.mrb[0].mxu0
    %v409 = vpop.f32.mrb[0].mxu0
    %410 = vdwg.mxu0
    %v411 = vadd.f32 %v193, %v406
    %412 = vxpose.xlu0.b32.start [1/16] %v411, 128
    %413 = vxpose.xlu0.b32.cont [2/16] 0.0, 128
    %414 = vxpose.xlu0.b32.cont [3/16] 0.0, 128
    %415 = vxpose.xlu0.b32.cont [4/16] 0.0, 128
    %416 = vxpose.xlu0.b32.cont [5/16] 0.0, 128
    %417 = vxpose.xlu0.b32.cont [6/16] 0.0, 128
    %418 = vxpose.xlu0.b32.cont [7/16] 0.0, 128
    %419 = vxpose.xlu0.b32.cont [8/16] 0.0, 128
    %420 = vxpose.xlu0.b32.cont [9/16] 0.0, 128
    %421 = vxpose.xlu0.b32.cont [10/16] 0.0, 128
    %422 = vxpose.xlu0.b32.cont [11/16] 0.0, 128
    %423 = vxpose.xlu0.b32.cont [12/16] 0.0, 128
    %424 = vxpose.xlu0.b32.cont [13/16] 0.0, 128
    %425 = vxpose.xlu0.b32.cont [14/16] 0.0, 128
    %426 = vxpose.xlu0.b32.cont [15/16] 0.0, 128
    %427 = vxpose.xlu0.b32.end [16/16] 0.0, 128
    %v428 = vpop.trf.xlu0
    %v429 = vpop.trf.xlu0
    %v430 = vpop.trf.xlu0
    %v431 = vpop.trf.xlu0
    %v432 = vpop.trf.xlu0
    %v433 = vpop.trf.xlu0
    %v434 = vpop.trf.xlu0
    %v435 = vpop.trf.xlu0
    %v436 = vpop.trf.xlu0
    %v437 = vpop.trf.xlu0
    %v438 = vpop.trf.xlu0
    %v439 = vpop.trf.xlu0
    %v440 = vpop.trf.xlu0
    %v441 = vpop.trf.xlu0
    %v442 = vpop.trf.xlu0
    %v443 = vpop.trf.xlu0
    %vm444 = vcmask 57344
    %445 = vst.msk [vmem:[#allocation10] sm:$0x1] %vm444, %v428
    // Predicated region
    $region38: #{tpu_custom_call.1} parent=1 // pred_check
      _
    $region39: #{tpu_custom_call.1} parent=1 // pred_check_branch
      %447 = sbr.rel (0) target = $region41
    $region40: #{tpu_custom_call.1} parent=1 // pred_region
      %s449 = ssub.s32 16, 16
      %450 = vsyncadd [#allocation4], %s449
      %s452 = sshll.u32 [#allocation10], 4
      %s453 = int_to_ptr.vmem [resolvable:$true] %s452
      %455 = dma.vmem_to_hbm [thread:$0]  %s453, 16, %s5, [#allocation4]
    $region41: #{tpu_custom_call.1} parent=1 // pred_fallthru
      _
    // Predicated region
    $region42: #{tpu_custom_call.1} parent=1 // pred_check
      _
    $region43: #{tpu_custom_call.1} parent=1 // pred_check_branch
      %457 = sbr.rel (0) target = $region45
    $region44: #{tpu_custom_call.1} parent=1 // pred_region
      %458 = dma.done [#allocation4], 16
    $region45: #{tpu_custom_call.1} parent=1 // pred_fallthru
      _
    %459 = vsyncpa [#allocation3], 1
    %460 = vsyncpa [#allocation6], 1
    %461 = vsyncpa [#allocation9], 1
    %462 = vsyncpa [#allocation4], 1

</llo_original>
